<compile_context>
chip_gen: v7x
topology: tpu7x:2x2x1
jax: 0.10.0
libtpu: 0.0.40
codegen_flags: <defaults>
</compile_context>

<pallas_src>
import functools

import jax
import jax.numpy as jnp
from jax.experimental import pallas as pl
from jax.experimental.pallas import tpu as pltpu

# ---------------- config (small synthetic shapes) ----------------
VOCAB_SIZE = 64
MAX_POS = 16
MAX_2D_POS = 32
TYPE_VOCAB = 2
HIDDEN = 128          # multiple of 128 -> lane-dense output stores
LAYER_NORM_EPS = 1e-12

BATCH = 2
SEQ = 8


# ------------------------------------------------------------------
# Kernel
# ------------------------------------------------------------------
def _embeddings_kernel(sizes, offsets,
                       word_ref, pos_ref, tt_ref, bbox_ref,
                       table_ref, gamma_ref, beta_ref, out_ref):
    """One row-tile: build multi-hot, one MXU matmul, LayerNorm."""
    tile_n = word_ref.shape[0]
    k_pad = table_ref.shape[0]

    # Raw index streams, all (tile_n, 1) int32.
    word_id = word_ref[...]
    pos_id = pos_ref[...]
    tt_id = tt_ref[...]
    x0 = bbox_ref[:, 0:1]
    y0 = bbox_ref[:, 1:2]
    x1 = bbox_ref[:, 2:3]
    y1 = bbox_ref[:, 3:4]

    # (table_idx, raw_index) for the 9 gathers of the reference module.
    streams = (
        (0, word_id),       # word
        (1, pos_id),        # position
        (2, x0),            # left   (x table)
        (3, y0),            # upper  (y table)
        (2, x1),            # right  (x table)
        (3, y1),            # lower  (y table)
        (4, y1 - y0),       # height
        (5, x1 - x0),       # width
        (6, tt_id),         # token type
    )

    # Single (1, k_pad) iota shared by all compares; broadcast does the rest.
    iota = jax.lax.broadcasted_iota(jnp.int32, (1, k_pad), 1)

    # Multi-hot accumulated in int32 (value 2 when x/y coords coincide), one cast.
    multi = jnp.zeros((tile_n, k_pad), jnp.int32)
    for t_idx, raw in streams:
        g = jnp.clip(raw, 0, sizes[t_idx] - 1) + offsets[t_idx]
        multi = multi + (g == iota).astype(jnp.int32)

    # One fused bf16 MXU matmul with f32 accumulation replaces the 9 gathers.
    emb = jnp.dot(multi.astype(jnp.bfloat16), table_ref[...],
                  preferred_element_type=jnp.float32)          # (tile_n, H)

    # LayerNorm over the hidden dim.
    mean = jnp.mean(emb, axis=-1, keepdims=True)
    centered = emb - mean
    var = jnp.mean(centered * centered, axis=-1, keepdims=True)
    normed = centered * jax.lax.rsqrt(var + LAYER_NORM_EPS)
    out_ref[...] = (normed * gamma_ref[...] + beta_ref[...]).astype(out_ref.dtype)


# ------------------------------------------------------------------
# One-time parameter packing (hoisted out of the forward path)
# ------------------------------------------------------------------
def pack_layoutlm_tables(params):
    """Concat the 7 embedding tables row-wise, pad to a multiple of 128 rows,
    cast to bf16. Call ONCE at parameter-init time, not per forward."""
    tables = [params["word"], params["pos"], params["x"], params["y"],
              params["h"], params["w"], params["tt"]]
    sizes = tuple(int(t.shape[0]) for t in tables)
    offsets, acc = [], 0
    for s in sizes:
        offsets.append(acc)
        acc += s
    total = acc
    h = int(params["word"].shape[1])
    k_pad = ((total + 127) // 128) * 128

    big = jnp.concatenate([t.astype(jnp.bfloat16) for t in tables], axis=0)
    if k_pad > total:
        big = jnp.concatenate(
            [big, jnp.zeros((k_pad - total, h), jnp.bfloat16)], axis=0)

    return {
        "table": big,                                             # (k_pad, H) bf16
        "gamma": params["gamma"].reshape(1, h).astype(jnp.float32),
        "beta": params["beta"].reshape(1, h).astype(jnp.float32),
        "sizes": sizes,
        "offsets": tuple(offsets),
    }


# ------------------------------------------------------------------
# Forward wrapper
# ------------------------------------------------------------------
def layoutlm_embeddings(packed, input_ids, bbox,
                        token_type_ids=None, position_ids=None):
    B, S = input_ids.shape
    table = packed["table"]
    k_pad, H = table.shape
    N = B * S

    if position_ids is None:
        position_ids = jnp.broadcast_to(
            jnp.arange(S, dtype=jnp.int32)[None, :], (B, S))
    if token_type_ids is None:
        token_type_ids = jnp.zeros_like(input_ids)

    # Row tile: fill the MXU when N is large; round up to sublane multiple when small.
    tile_n = 256 if N >= 256 else ((N + 7) // 8) * 8
    n_pad = ((N + tile_n - 1) // tile_n) * tile_n

    def _flat(x, w):
        x = x.astype(jnp.int32).reshape(N, w)
        if n_pad > N:
            x = jnp.concatenate([x, jnp.zeros((n_pad - N, w), jnp.int32)], 0)
        return x

    word = _flat(input_ids, 1)
    pos = _flat(position_ids, 1)
    tt = _flat(token_type_ids, 1)
    bx = _flat(bbox, 4)

    kernel = functools.partial(_embeddings_kernel,
                               packed["sizes"], packed["offsets"])

    out = pl.pallas_call(
        kernel,
        out_shape=jax.ShapeDtypeStruct((n_pad, H), jnp.float32),
        grid_spec=pltpu.PrefetchScalarGridSpec(
            num_scalar_prefetch=0,
            grid=(n_pad // tile_n,),
            in_specs=[
                pl.BlockSpec((tile_n, 1), lambda i: (i, 0)),    # word ids
                pl.BlockSpec((tile_n, 1), lambda i: (i, 0)),    # position ids
                pl.BlockSpec((tile_n, 1), lambda i: (i, 0)),    # token type ids
                pl.BlockSpec((tile_n, 4), lambda i: (i, 0)),    # bbox
                pl.BlockSpec((k_pad, H), lambda i: (0, 0)),     # table (resident)
                pl.BlockSpec((1, H), lambda i: (0, 0)),         # gamma
                pl.BlockSpec((1, H), lambda i: (0, 0)),         # beta
            ],
            out_specs=pl.BlockSpec((tile_n, H), lambda i: (i, 0)),
        ),
        compiler_params=pltpu.CompilerParams(
            dimension_semantics=("parallel",)),
    )(word, pos, tt, bx, table, packed["gamma"], packed["beta"])

    return out[:N].reshape(B, S, H)


# ------------------------------------------------------------------
# Pure-JAX reference (f32 tables)
# ------------------------------------------------------------------
def _ref_forward(input_ids, bbox, params):
    B, S = input_ids.shape
    position_ids = jnp.broadcast_to(jnp.arange(S, dtype=jnp.int32)[None, :],
                                    (B, S))
    token_type_ids = jnp.zeros_like(input_ids)
    e = (params["word"][input_ids]
         + params["pos"][position_ids]
         + params["x"][bbox[:, :, 0]]
         + params["y"][bbox[:, :, 1]]
         + params["x"][bbox[:, :, 2]]
         + params["y"][bbox[:, :, 3]]
         + params["h"][bbox[:, :, 3] - bbox[:, :, 1]]
         + params["w"][bbox[:, :, 2] - bbox[:, :, 0]]
         + params["tt"][token_type_ids])
    mean = jnp.mean(e, axis=-1, keepdims=True)
    var = jnp.mean((e - mean) ** 2, axis=-1, keepdims=True)
    n = (e - mean) / jnp.sqrt(var + LAYER_NORM_EPS)
    return n * params["gamma"] + params["beta"]


if __name__ == "__main__":
    key = jax.random.PRNGKey(0)
    keys = jax.random.split(key, 12)

    def init_table(k, n, h):
        return 0.02 * jax.random.normal(k, (n, h), dtype=jnp.float32)

    word = init_table(keys[0], VOCAB_SIZE, HIDDEN)
    word = word.at[0].set(0.0)  # padding_idx=0
    params = {
        "word": word,
        "pos": init_table(keys[1], MAX_POS, HIDDEN),
        "x": init_table(keys[2], MAX_2D_POS, HIDDEN),
        "y": init_table(keys[3], MAX_2D_POS, HIDDEN),
        "h": init_table(keys[4], MAX_2D_POS, HIDDEN),
        "w": init_table(keys[5], MAX_2D_POS, HIDDEN),
        "tt": init_table(keys[6], TYPE_VOCAB, HIDDEN),
        "gamma": jnp.ones((HIDDEN,), jnp.float32),
        "beta": jnp.zeros((HIDDEN,), jnp.float32),
    }

    # One-time packing (not on the per-call path).
    packed = pack_layoutlm_tables(params)

    input_ids = jax.random.randint(keys[7], (BATCH, SEQ), 0, VOCAB_SIZE,
                                   dtype=jnp.int32)
    x0 = jax.random.randint(keys[8], (BATCH, SEQ), 0, MAX_2D_POS // 2, dtype=jnp.int32)
    y0 = jax.random.randint(keys[9], (BATCH, SEQ), 0, MAX_2D_POS // 2, dtype=jnp.int32)
    dw = jax.random.randint(keys[10], (BATCH, SEQ), 0, MAX_2D_POS // 2, dtype=jnp.int32)
    dh = jax.random.randint(keys[11], (BATCH, SEQ), 0, MAX_2D_POS // 2, dtype=jnp.int32)
    bbox = jnp.stack([x0, y0, x0 + dw, y0 + dh], axis=-1)  # (B, S, 4)

    out = layoutlm_embeddings(packed, input_ids, bbox)
    out = jax.block_until_ready(out)

    ref = _ref_forward(input_ids, bbox, params)
    assert out.shape == (BATCH, SEQ, HIDDEN)
    # bf16 table rounding (~2^-9 relative) after LayerNorm -> a few 1e-3 abs.
    assert jnp.allclose(out, ref, atol=2.5e-2, rtol=0), \
        f"max abs diff {jnp.max(jnp.abs(out - ref))}"
    print("KERNEL_OK")
</pallas_src>

<mosaic_0001>
module attributes {stable_mosaic.version = 11 : i64} {
  func.func @_embeddings_kernel(%arg0: i32, %arg1: memref<16x1xi32, #tpu.memory_space<vmem>>, %arg2: memref<16x1xi32, #tpu.memory_space<vmem>>, %arg3: memref<16x1xi32, #tpu.memory_space<vmem>>, %arg4: memref<16x4xi32, #tpu.memory_space<vmem>>, %arg5: memref<256x128xbf16, #tpu.memory_space<vmem>>, %arg6: memref<1x128xf32, #tpu.memory_space<vmem>>, %arg7: memref<1x128xf32, #tpu.memory_space<vmem>>, %arg8: memref<16x128xf32, #tpu.memory_space<vmem>>) attributes {dimension_semantics = [#tpu.dimension_semantics<parallel>], iteration_bounds = array<i64: 1>, scalar_prefetch = 0 : i64, scratch_operands = 0 : i64, tpu.core_type = #tpu.core_type<tc>, window_params = [{transform_indices = @transform_0, window_bounds = array<i64: 16, 1>}, {transform_indices = @transform_1, window_bounds = array<i64: 16, 1>}, {transform_indices = @transform_2, window_bounds = array<i64: 16, 1>}, {transform_indices = @transform_3, window_bounds = array<i64: 16, 4>}, {pipeline_mode = #tpu.pipeline_mode<synchronous>, transform_indices = @transform_4, window_bounds = array<i64: 256, 128>}, {pipeline_mode = #tpu.pipeline_mode<synchronous>, transform_indices = @transform_5, window_bounds = array<i64: 1, 128>}, {pipeline_mode = #tpu.pipeline_mode<synchronous>, transform_indices = @transform_6, window_bounds = array<i64: 1, 128>}, {transform_indices = @transform_7, window_bounds = array<i64: 16, 128>}]} {
    %c0 = arith.constant 0 : index
    %c0_0 = arith.constant 0 : index
    %0 = vector.load %arg1[%c0, %c0_0] : memref<16x1xi32, #tpu.memory_space<vmem>>, vector<16x1xi32>
    %c0_1 = arith.constant 0 : index
    %c0_2 = arith.constant 0 : index
    %1 = vector.load %arg2[%c0_1, %c0_2] : memref<16x1xi32, #tpu.memory_space<vmem>>, vector<16x1xi32>
    %c0_3 = arith.constant 0 : index
    %c0_4 = arith.constant 0 : index
    %2 = vector.load %arg3[%c0_3, %c0_4] : memref<16x1xi32, #tpu.memory_space<vmem>>, vector<16x1xi32>
    %c0_5 = arith.constant 0 : index
    %c0_6 = arith.constant 0 : index
    %3 = vector.load %arg4[%c0_5, %c0_6] : memref<16x4xi32, #tpu.memory_space<vmem>>, vector<16x1xi32>
    %c0_7 = arith.constant 0 : index
    %c1 = arith.constant 1 : index
    %4 = vector.load %arg4[%c0_7, %c1] : memref<16x4xi32, #tpu.memory_space<vmem>>, vector<16x1xi32>
    %c0_8 = arith.constant 0 : index
    %c2 = arith.constant 2 : index
    %5 = vector.load %arg4[%c0_8, %c2] : memref<16x4xi32, #tpu.memory_space<vmem>>, vector<16x1xi32>
    %c0_9 = arith.constant 0 : index
    %c3 = arith.constant 3 : index
    %6 = vector.load %arg4[%c0_9, %c3] : memref<16x4xi32, #tpu.memory_space<vmem>>, vector<16x1xi32>
    %7 = arith.subi %6, %4 : vector<16x1xi32>
    %8 = arith.subi %5, %3 : vector<16x1xi32>
    %9 = tpu.iota {dimensions = array<i32: 1>} : vector<1x256xi32>
    %c0_i32 = arith.constant 0 : i32
    %10 = vector.broadcast %c0_i32 : i32 to vector<16x256xi32>
    %c0_i32_10 = arith.constant 0 : i32
    %c63_i32 = arith.constant 63 : i32
    %11 = vector.broadcast %c0_i32_10 : i32 to vector<16x1xi32>
    %12 = arith.maxsi %11, %0 : vector<16x1xi32>
    %13 = vector.broadcast %c63_i32 : i32 to vector<16x1xi32>
    %14 = arith.minsi %13, %12 : vector<16x1xi32>
    %c0_i32_11 = arith.constant 0 : i32
    %15 = vector.broadcast %c0_i32_11 : i32 to vector<16x1xi32>
    %16 = arith.addi %14, %15 : vector<16x1xi32>
    %17 = vector.broadcast %16 : vector<16x1xi32> to vector<16x256xi32>
    %18 = vector.broadcast %9 : vector<1x256xi32> to vector<16x256xi32>
    %19 = arith.cmpi eq, %17, %18 : vector<16x256xi32>
    %20 = arith.extui %19 : vector<16x256xi1> to vector<16x256xi32>
    %21 = arith.addi %10, %20 : vector<16x256xi32>
    %c0_i32_12 = arith.constant 0 : i32
    %c15_i32 = arith.constant 15 : i32
    %22 = vector.broadcast %c0_i32_12 : i32 to vector<16x1xi32>
    %23 = arith.maxsi %22, %1 : vector<16x1xi32>
    %24 = vector.broadcast %c15_i32 : i32 to vector<16x1xi32>
    %25 = arith.minsi %24, %23 : vector<16x1xi32>
    %c64_i32 = arith.constant 64 : i32
    %26 = vector.broadcast %c64_i32 : i32 to vector<16x1xi32>
    %27 = arith.addi %25, %26 : vector<16x1xi32>
    %28 = vector.broadcast %27 : vector<16x1xi32> to vector<16x256xi32>
    %29 = vector.broadcast %9 : vector<1x256xi32> to vector<16x256xi32>
    %30 = arith.cmpi eq, %28, %29 : vector<16x256xi32>
    %31 = arith.extui %30 : vector<16x256xi1> to vector<16x256xi32>
    %32 = arith.addi %21, %31 : vector<16x256xi32>
    %c0_i32_13 = arith.constant 0 : i32
    %c31_i32 = arith.constant 31 : i32
    %33 = vector.broadcast %c0_i32_13 : i32 to vector<16x1xi32>
    %34 = arith.maxsi %33, %3 : vector<16x1xi32>
    %35 = vector.broadcast %c31_i32 : i32 to vector<16x1xi32>
    %36 = arith.minsi %35, %34 : vector<16x1xi32>
    %c80_i32 = arith.constant 80 : i32
    %37 = vector.broadcast %c80_i32 : i32 to vector<16x1xi32>
    %38 = arith.addi %36, %37 : vector<16x1xi32>
    %39 = vector.broadcast %38 : vector<16x1xi32> to vector<16x256xi32>
    %40 = vector.broadcast %9 : vector<1x256xi32> to vector<16x256xi32>
    %41 = arith.cmpi eq, %39, %40 : vector<16x256xi32>
    %42 = arith.extui %41 : vector<16x256xi1> to vector<16x256xi32>
    %43 = arith.addi %32, %42 : vector<16x256xi32>
    %c0_i32_14 = arith.constant 0 : i32
    %c31_i32_15 = arith.constant 31 : i32
    %44 = vector.broadcast %c0_i32_14 : i32 to vector<16x1xi32>
    %45 = arith.maxsi %44, %4 : vector<16x1xi32>
    %46 = vector.broadcast %c31_i32_15 : i32 to vector<16x1xi32>
    %47 = arith.minsi %46, %45 : vector<16x1xi32>
    %c112_i32 = arith.constant 112 : i32
    %48 = vector.broadcast %c112_i32 : i32 to vector<16x1xi32>
    %49 = arith.addi %47, %48 : vector<16x1xi32>
    %50 = vector.broadcast %49 : vector<16x1xi32> to vector<16x256xi32>
    %51 = vector.broadcast %9 : vector<1x256xi32> to vector<16x256xi32>
    %52 = arith.cmpi eq, %50, %51 : vector<16x256xi32>
    %53 = arith.extui %52 : vector<16x256xi1> to vector<16x256xi32>
    %54 = arith.addi %43, %53 : vector<16x256xi32>
    %c0_i32_16 = arith.constant 0 : i32
    %c31_i32_17 = arith.constant 31 : i32
    %55 = vector.broadcast %c0_i32_16 : i32 to vector<16x1xi32>
    %56 = arith.maxsi %55, %5 : vector<16x1xi32>
    %57 = vector.broadcast %c31_i32_17 : i32 to vector<16x1xi32>
    %58 = arith.minsi %57, %56 : vector<16x1xi32>
    %c80_i32_18 = arith.constant 80 : i32
    %59 = vector.broadcast %c80_i32_18 : i32 to vector<16x1xi32>
    %60 = arith.addi %58, %59 : vector<16x1xi32>
    %61 = vector.broadcast %60 : vector<16x1xi32> to vector<16x256xi32>
    %62 = vector.broadcast %9 : vector<1x256xi32> to vector<16x256xi32>
    %63 = arith.cmpi eq, %61, %62 : vector<16x256xi32>
    %64 = arith.extui %63 : vector<16x256xi1> to vector<16x256xi32>
    %65 = arith.addi %54, %64 : vector<16x256xi32>
    %c0_i32_19 = arith.constant 0 : i32
    %c31_i32_20 = arith.constant 31 : i32
    %66 = vector.broadcast %c0_i32_19 : i32 to vector<16x1xi32>
    %67 = arith.maxsi %66, %6 : vector<16x1xi32>
    %68 = vector.broadcast %c31_i32_20 : i32 to vector<16x1xi32>
    %69 = arith.minsi %68, %67 : vector<16x1xi32>
    %c112_i32_21 = arith.constant 112 : i32
    %70 = vector.broadcast %c112_i32_21 : i32 to vector<16x1xi32>
    %71 = arith.addi %69, %70 : vector<16x1xi32>
    %72 = vector.broadcast %71 : vector<16x1xi32> to vector<16x256xi32>
    %73 = vector.broadcast %9 : vector<1x256xi32> to vector<16x256xi32>
    %74 = arith.cmpi eq, %72, %73 : vector<16x256xi32>
    %75 = arith.extui %74 : vector<16x256xi1> to vector<16x256xi32>
    %76 = arith.addi %65, %75 : vector<16x256xi32>
    %c0_i32_22 = arith.constant 0 : i32
    %c31_i32_23 = arith.constant 31 : i32
    %77 = vector.broadcast %c0_i32_22 : i32 to vector<16x1xi32>
    %78 = arith.maxsi %77, %7 : vector<16x1xi32>
    %79 = vector.broadcast %c31_i32_23 : i32 to vector<16x1xi32>
    %80 = arith.minsi %79, %78 : vector<16x1xi32>
    %c144_i32 = arith.constant 144 : i32
    %81 = vector.broadcast %c144_i32 : i32 to vector<16x1xi32>
    %82 = arith.addi %80, %81 : vector<16x1xi32>
    %83 = vector.broadcast %82 : vector<16x1xi32> to vector<16x256xi32>
    %84 = vector.broadcast %9 : vector<1x256xi32> to vector<16x256xi32>
    %85 = arith.cmpi eq, %83, %84 : vector<16x256xi32>
    %86 = arith.extui %85 : vector<16x256xi1> to vector<16x256xi32>
    %87 = arith.addi %76, %86 : vector<16x256xi32>
    %c0_i32_24 = arith.constant 0 : i32
    %c31_i32_25 = arith.constant 31 : i32
    %88 = vector.broadcast %c0_i32_24 : i32 to vector<16x1xi32>
    %89 = arith.maxsi %88, %8 : vector<16x1xi32>
    %90 = vector.broadcast %c31_i32_25 : i32 to vector<16x1xi32>
    %91 = arith.minsi %90, %89 : vector<16x1xi32>
    %c176_i32 = arith.constant 176 : i32
    %92 = vector.broadcast %c176_i32 : i32 to vector<16x1xi32>
    %93 = arith.addi %91, %92 : vector<16x1xi32>
    %94 = vector.broadcast %93 : vector<16x1xi32> to vector<16x256xi32>
    %95 = vector.broadcast %9 : vector<1x256xi32> to vector<16x256xi32>
    %96 = arith.cmpi eq, %94, %95 : vector<16x256xi32>
    %97 = arith.extui %96 : vector<16x256xi1> to vector<16x256xi32>
    %98 = arith.addi %87, %97 : vector<16x256xi32>
    %c0_i32_26 = arith.constant 0 : i32
    %c1_i32 = arith.constant 1 : i32
    %99 = vector.broadcast %c0_i32_26 : i32 to vector<16x1xi32>
    %100 = arith.maxsi %99, %2 : vector<16x1xi32>
    %101 = vector.broadcast %c1_i32 : i32 to vector<16x1xi32>
    %102 = arith.minsi %101, %100 : vector<16x1xi32>
    %c208_i32 = arith.constant 208 : i32
    %103 = vector.broadcast %c208_i32 : i32 to vector<16x1xi32>
    %104 = arith.addi %102, %103 : vector<16x1xi32>
    %105 = vector.broadcast %104 : vector<16x1xi32> to vector<16x256xi32>
    %106 = vector.broadcast %9 : vector<1x256xi32> to vector<16x256xi32>
    %107 = arith.cmpi eq, %105, %106 : vector<16x256xi32>
    %108 = arith.extui %107 : vector<16x256xi1> to vector<16x256xi32>
    %109 = arith.addi %98, %108 : vector<16x256xi32>
    %110 = arith.sitofp %109 : vector<16x256xi32> to vector<16x256xbf16>
    %c0_27 = arith.constant 0 : index
    %c0_28 = arith.constant 0 : index
    %111 = vector.load %arg5[%c0_27, %c0_28] : memref<256x128xbf16, #tpu.memory_space<vmem>>, vector<256x128xbf16>
    %cst = arith.constant dense<0.000000e+00> : vector<16x128xf32>
    %112 = tpu.matmul %110, %111, %cst {dimension_numbers = #tpu.dot_dimension_numbers<[1], [0], [0], [1], [0, 0, 1, 1], [], []>} : vector<16x256xbf16>, vector<256x128xbf16>, vector<16x128xf32> -> vector<16x128xf32>
    %cst_29 = arith.constant dense<0.000000e+00> : vector<16xf32>
    %113 = vector.multi_reduction <add>, %112, %cst_29 [1] : vector<16x128xf32> to vector<16xf32>
    %114 = vector.shape_cast %113 : vector<16xf32> to vector<16x1xf32>
    %cst_30 = arith.constant 1.280000e+02 : f32
    %115 = vector.broadcast %cst_30 : f32 to vector<16x1xf32>
    %116 = arith.divf %114, %115 : vector<16x1xf32>
    %117 = vector.broadcast %116 : vector<16x1xf32> to vector<16x128xf32>
    %118 = arith.subf %112, %117 : vector<16x128xf32>
    %119 = arith.mulf %118, %118 : vector<16x128xf32>
    %cst_31 = arith.constant dense<0.000000e+00> : vector<16xf32>
    %120 = vector.multi_reduction <add>, %119, %cst_31 [1] : vector<16x128xf32> to vector<16xf32>
    %121 = vector.shape_cast %120 : vector<16xf32> to vector<16x1xf32>
    %cst_32 = arith.constant 1.280000e+02 : f32
    %122 = vector.broadcast %cst_32 : f32 to vector<16x1xf32>
    %123 = arith.divf %121, %122 : vector<16x1xf32>
    %cst_33 = arith.constant 9.99999996E-13 : f32
    %124 = vector.broadcast %cst_33 : f32 to vector<16x1xf32>
    %125 = arith.addf %123, %124 : vector<16x1xf32>
    %126 = math.rsqrt %125 : vector<16x1xf32>
    %127 = vector.broadcast %126 : vector<16x1xf32> to vector<16x128xf32>
    %128 = arith.mulf %118, %127 : vector<16x128xf32>
    %c0_34 = arith.constant 0 : index
    %c0_35 = arith.constant 0 : index
    %129 = vector.load %arg6[%c0_34, %c0_35] : memref<1x128xf32, #tpu.memory_space<vmem>>, vector<1x128xf32>
    %130 = vector.broadcast %129 : vector<1x128xf32> to vector<16x128xf32>
    %131 = arith.mulf %128, %130 : vector<16x128xf32>
    %c0_36 = arith.constant 0 : index
    %c0_37 = arith.constant 0 : index
    %132 = vector.load %arg7[%c0_36, %c0_37] : memref<1x128xf32, #tpu.memory_space<vmem>>, vector<1x128xf32>
    %133 = vector.broadcast %132 : vector<1x128xf32> to vector<16x128xf32>
    %134 = arith.addf %131, %133 : vector<16x128xf32>
    %c0_38 = arith.constant 0 : index
    %c0_39 = arith.constant 0 : index
    %135 = vector.load %arg8[%c0_38, %c0_39] : memref<16x128xf32, #tpu.memory_space<vmem>>, vector<16x128xf32>
    tpu.vector_store %arg8[%c0_38, %c0_39], %134 {strides = array<i32>} : memref<16x128xf32, #tpu.memory_space<vmem>>, vector<16x128xf32>,
    return
  }
  func.func @transform_0(%arg0: i32) -> (i32, i32) {
    %c0_i32 = arith.constant 0 : i32
    %c0_i32_0 = arith.constant 0 : i32
    return %arg0, %c0_i32 : i32, i32
  }
  func.func @transform_1(%arg0: i32) -> (i32, i32) {
    %c0_i32 = arith.constant 0 : i32
    %c0_i32_0 = arith.constant 0 : i32
    return %arg0, %c0_i32 : i32, i32
  }
  func.func @transform_2(%arg0: i32) -> (i32, i32) {
    %c0_i32 = arith.constant 0 : i32
    %c0_i32_0 = arith.constant 0 : i32
    return %arg0, %c0_i32 : i32, i32
  }
  func.func @transform_3(%arg0: i32) -> (i32, i32) {
    %c0_i32 = arith.constant 0 : i32
    %c0_i32_0 = arith.constant 0 : i32
    return %arg0, %c0_i32 : i32, i32
  }
  func.func @transform_4(%arg0: i32) -> (i32, i32) {
    %c0_i32 = arith.constant 0 : i32
    %c0_i32_0 = arith.constant 0 : i32
    %c0_i32_1 = arith.constant 0 : i32
    return %c0_i32, %c0_i32_0 : i32, i32
  }
  func.func @transform_5(%arg0: i32) -> (i32, i32) {
    %c0_i32 = arith.constant 0 : i32
    %c0_i32_0 = arith.constant 0 : i32
    %c0_i32_1 = arith.constant 0 : i32
    return %c0_i32, %c0_i32_0 : i32, i32
  }
  func.func @transform_6(%arg0: i32) -> (i32, i32) {
    %c0_i32 = arith.constant 0 : i32
    %c0_i32_0 = arith.constant 0 : i32
    %c0_i32_1 = arith.constant 0 : i32
    return %c0_i32, %c0_i32_0 : i32, i32
  }
  func.func @transform_7(%arg0: i32) -> (i32, i32) {
    %c0_i32 = arith.constant 0 : i32
    %c0_i32_0 = arith.constant 0 : i32
    return %arg0, %c0_i32 : i32, i32
  }
}

</mosaic_0001>

<llo_original>
// kernel: tpu_custom_call.1
$region0: #{tpu_custom_call.1}
  #allocation0 [shape = 'u32[]', space=smem, size = 0x4, offset = 0x4, fixed_abs, tag = 'smem constant byte address 0x4 - core index']
  #allocation1 [shape = 'u32[144,128]{1,0:T(1,128)}', space=vmem, size = 0x12000, scoped, tag = 'internal scratch']
  %s0 = inlined_call_operand.vmem [shape: s32[16,1], index: 0, kind: input, shape index: {}]
  %s1 = inlined_call_operand.vmem [shape: s32[16,1], index: 1, kind: input, shape index: {}]
  %s2 = inlined_call_operand.vmem [shape: s32[16,1], index: 2, kind: input, shape index: {}]
  %s3 = inlined_call_operand.vmem [shape: s32[16,4], index: 3, kind: input, shape index: {}]
  %s4 = inlined_call_operand.hbm [shape: bf16[256,128], index: 4, kind: input, shape index: {}]
  %s5 = inlined_call_operand.vmem [shape: f32[1,128], index: 5, kind: input, shape index: {}]
  %s6 = inlined_call_operand.vmem [shape: f32[1,128], index: 6, kind: input, shape index: {}]
  %s7 = inlined_call_operand.hbm [shape: f32[16,128], index: 7, kind: output, shape index: {}]
  %s8 = sld [smem:[#allocation0]]
  $region42: #{tpu_custom_call.1} parent=0
    _
  %s10 = ssub.s32 1, %s8
  %s11 = scalar_select 0, %s10, %s8
  $region1: #{tpu_custom_call.1} parent=0
    #allocation2 [shape = 'u8[65536]{0}', space=vmem, size = 0x10000, scoped, tag = 'input window, operand 4, single buffered']
    #allocation3 [shape = 's32[1]{0}', space=sflag, size = 0x4, scoped, tag = 'scoped memory for tpu_custom_call.1']
    #allocation4 [shape = 's32[1]{0}', space=sflag, size = 0x4, scoped, tag = 'scoped memory for tpu_custom_call.1']
    #allocation5 [shape = 'u8[8192]{0}', space=vmem, size = 0x2000, scoped, tag = 'output window, operand 0, single buffered']
    %12 = vsyncpa [#allocation3], 0
    %13 = vsyncpa [#allocation4], 0
    // Predicated region
    $region2: #{tpu_custom_call.1} parent=1 // pred_check
      _
    $region3: #{tpu_custom_call.1} parent=1 // pred_check_branch
      %15 = sbr.rel (0) target = $region5
    $region4: #{tpu_custom_call.1} parent=1 // pred_region
      _
    $region5: #{tpu_custom_call.1} parent=1 // pred_fallthru
      _
    // Predicated region
    $region6: #{tpu_custom_call.1} parent=1 // pred_check
      _
    $region7: #{tpu_custom_call.1} parent=1 // pred_check_branch
      %17 = sbr.rel (0) target = $region9
    $region8: #{tpu_custom_call.1} parent=1 // pred_region
      _
    $region9: #{tpu_custom_call.1} parent=1 // pred_fallthru
      _
    // Predicated region
    $region10: #{tpu_custom_call.1} parent=1 // pred_check
      _
    $region11: #{tpu_custom_call.1} parent=1 // pred_check_branch
      %19 = sbr.rel (0) target = $region13
    $region12: #{tpu_custom_call.1} parent=1 // pred_region
      _
    $region13: #{tpu_custom_call.1} parent=1 // pred_fallthru
      _
    // Predicated region
    $region14: #{tpu_custom_call.1} parent=1 // pred_check
      _
    $region15: #{tpu_custom_call.1} parent=1 // pred_check_branch
      %21 = sbr.rel (0) target = $region17
    $region16: #{tpu_custom_call.1} parent=1 // pred_region
      _
    $region17: #{tpu_custom_call.1} parent=1 // pred_fallthru
      _
    // Predicated region
    $region18: #{tpu_custom_call.1} parent=1 // pred_check
      _
    $region19: #{tpu_custom_call.1} parent=1 // pred_check_branch
      %23 = sbr.rel (0) target = $region21
    $region20: #{tpu_custom_call.1} parent=1 // pred_region
      %s25 = ssub.s32 2048, 2048
      %26 = vsyncadd [#allocation3], %s25
      %s27 = sshll.u32 [#allocation2], 4
      %s28 = int_to_ptr.vmem [resolvable:$true] %s27
      %33 = dma.hbm_to_vmem [thread:$0]  %s4, 2048, %s28, [#allocation3], 64, 64, 4
    $region21: #{tpu_custom_call.1} parent=1 // pred_fallthru
      _
    // Predicated region
    $region22: #{tpu_custom_call.1} parent=1 // pred_check
      _
    $region23: #{tpu_custom_call.1} parent=1 // pred_check_branch
      %35 = sbr.rel (0) target = $region25
    $region24: #{tpu_custom_call.1} parent=1 // pred_region
      _
    $region25: #{tpu_custom_call.1} parent=1 // pred_fallthru
      _
    // Predicated region
    $region26: #{tpu_custom_call.1} parent=1 // pred_check
      _
    $region27: #{tpu_custom_call.1} parent=1 // pred_check_branch
      %37 = sbr.rel (0) target = $region29
    $region28: #{tpu_custom_call.1} parent=1 // pred_region
      _
    $region29: #{tpu_custom_call.1} parent=1 // pred_fallthru
      _
    // Predicated region
    $region30: #{tpu_custom_call.1} parent=1 // pred_check
      _
    $region31: #{tpu_custom_call.1} parent=1 // pred_check_branch
      %39 = sbr.rel (0) target = $region33
    $region32: #{tpu_custom_call.1} parent=1 // pred_region
      %40 = dma.done [#allocation3], 2048
    $region33: #{tpu_custom_call.1} parent=1 // pred_fallthru
      _
    %v42 = vld [vmem:[%s0] sm:$0xff]
    %v43 = vld [vmem:[%s0 + $0x8] sm:$0xff]
    %v44 = vld [vmem:[%s1] sm:$0xff]
    %v45 = vld [vmem:[%s1 + $0x8] sm:$0xff]
    %v46 = vld [vmem:[%s2] sm:$0xff]
    %v47 = vld [vmem:[%s2 + $0x8] sm:$0xff]
    %v48 = vld [vmem:[%s3] sm:$0xff]
    %v49 = vld [vmem:[%s3 + $0x8] sm:$0xff]
    %50 = vrot.lane.b32.xlu0 %v48, 2
    %v51 = vpop.permute.xlu0 %50
    %52 = vrot.lane.b32.xlu0 %v49, 2
    %v53 = vpop.permute.xlu0 %52
    %v54 = vsub.s32 %v48, %v51
    %v55 = vsub.s32 %v49, %v53
    %v56 = vlaneseq
    %v57 = vand.u32 %v56, 127
    %v58 = vadd.s32 %v57, 128
    %vm59 = vcmp.gt.s32.totalorder %v42, 0
    %v60 = vsel %vm59, %v42, 0
    %vm61 = vcmp.gt.s32.totalorder %v43, 0
    %v62 = vsel %vm61, %v43, 0
    %vm63 = vcmp.lt.s32.totalorder %v60, 63
    %v64 = vsel %vm63, %v60, 63
    %vm65 = vcmp.lt.s32.totalorder %v62, 63
    %v66 = vsel %vm65, %v62, 63
    %67 = vset.pattern.permute.xlu0 0
    %68 = vperm.xlu0 %67, %v64
    %v69 = vpop.permute.xlu0 %68
    %70 = vset.pattern.permute.xlu0 0
    %71 = vperm.xlu0 %70, %v66
    %v72 = vpop.permute.xlu0 %71
    %vm73 = vcmp.eq.s32.totalorder %v69, %v57
    %vm74 = vcmp.eq.s32.totalorder %v69, %v58
    %vm75 = vcmp.eq.s32.totalorder %v72, %v57
    %vm76 = vcmp.eq.s32.totalorder %v72, %v58
    %v77 = vsel %vm73, 1, 0
    %v78 = vsel %vm74, 1, 0
    %v79 = vsel %vm75, 1, 0
    %v80 = vsel %vm76, 1, 0
    %vm81 = vcmp.gt.s32.totalorder %v44, 0
    %v82 = vsel %vm81, %v44, 0
    %vm83 = vcmp.gt.s32.totalorder %v45, 0
    %v84 = vsel %vm83, %v45, 0
    %vm85 = vcmp.lt.s32.totalorder %v82, 15
    %v86 = vsel %vm85, %v82, 15
    %vm87 = vcmp.lt.s32.totalorder %v84, 15
    %v88 = vsel %vm87, %v84, 15
    %v89 = vadd.s32 %v86, 64
    %v90 = vadd.s32 %v88, 64
    %91 = vset.pattern.permute.xlu0 0
    %92 = vperm.xlu0 %91, %v89
    %v93 = vpop.permute.xlu0 %92
    %94 = vset.pattern.permute.xlu0 0
    %95 = vperm.xlu0 %94, %v90
    %v96 = vpop.permute.xlu0 %95
    %vm97 = vcmp.eq.s32.totalorder %v93, %v57
    %vm98 = vcmp.eq.s32.totalorder %v93, %v58
    %vm99 = vcmp.eq.s32.totalorder %v96, %v57
    %vm100 = vcmp.eq.s32.totalorder %v96, %v58
    %v101 = vsel %vm97, 1, 0
    %v102 = vsel %vm98, 1, 0
    %v103 = vsel %vm99, 1, 0
    %v104 = vsel %vm100, 1, 0
    %v105 = vadd.s32 %v77, %v101
    %v106 = vadd.s32 %v78, %v102
    %v107 = vadd.s32 %v79, %v103
    %v108 = vadd.s32 %v80, %v104
    %vm109 = vcmp.gt.s32.totalorder %v48, 0
    %v110 = vsel %vm109, %v48, 0
    %vm111 = vcmp.gt.s32.totalorder %v49, 0
    %v112 = vsel %vm111, %v49, 0
    %vm113 = vcmp.lt.s32.totalorder %v110, 31
    %v114 = vsel %vm113, %v110, 31
    %vm115 = vcmp.lt.s32.totalorder %v112, 31
    %v116 = vsel %vm115, %v112, 31
    %v117 = vadd.s32 %v114, 80
    %v118 = vadd.s32 %v116, 80
    %119 = vset.pattern.permute.xlu0 0
    %120 = vperm.xlu0 %119, %v117
    %v121 = vpop.permute.xlu0 %120
    %122 = vset.pattern.permute.xlu0 0
    %123 = vperm.xlu0 %122, %v118
    %v124 = vpop.permute.xlu0 %123
    %vm125 = vcmp.eq.s32.totalorder %v121, %v57
    %vm126 = vcmp.eq.s32.totalorder %v121, %v58
    %vm127 = vcmp.eq.s32.totalorder %v124, %v57
    %vm128 = vcmp.eq.s32.totalorder %v124, %v58
    %v129 = vsel %vm125, 1, 0
    %v130 = vsel %vm126, 1, 0
    %v131 = vsel %vm127, 1, 0
    %v132 = vsel %vm128, 1, 0
    %v133 = vadd.s32 %v105, %v129
    %v134 = vadd.s32 %v106, %v130
    %v135 = vadd.s32 %v107, %v131
    %v136 = vadd.s32 %v108, %v132
    %v137 = vadd.s32 %v114, 112
    %v138 = vadd.s32 %v116, 112
    %139 = vset.pattern.permute.xlu0 1
    %140 = vperm.xlu0 %139, %v137
    %v141 = vpop.permute.xlu0 %140
    %142 = vset.pattern.permute.xlu0 1
    %143 = vperm.xlu0 %142, %v138
    %v144 = vpop.permute.xlu0 %143
    %vm145 = vcmp.eq.s32.totalorder %v141, %v57
    %vm146 = vcmp.eq.s32.totalorder %v141, %v58
    %vm147 = vcmp.eq.s32.totalorder %v144, %v57
    %vm148 = vcmp.eq.s32.totalorder %v144, %v58
    %v149 = vsel %vm145, 1, 0
    %v150 = vsel %vm146, 1, 0
    %v151 = vsel %vm147, 1, 0
    %v152 = vsel %vm148, 1, 0
    %v153 = vadd.s32 %v133, %v149
    %v154 = vadd.s32 %v134, %v150
    %v155 = vadd.s32 %v135, %v151
    %v156 = vadd.s32 %v136, %v152
    %157 = vset.pattern.permute.xlu0 2
    %158 = vperm.xlu0 %157, %v117
    %v159 = vpop.permute.xlu0 %158
    %160 = vset.pattern.permute.xlu0 2
    %161 = vperm.xlu0 %160, %v118
    %v162 = vpop.permute.xlu0 %161
    %vm163 = vcmp.eq.s32.totalorder %v159, %v57
    %vm164 = vcmp.eq.s32.totalorder %v159, %v58
    %vm165 = vcmp.eq.s32.totalorder %v162, %v57
    %vm166 = vcmp.eq.s32.totalorder %v162, %v58
    %v167 = vsel %vm163, 1, 0
    %v168 = vsel %vm164, 1, 0
    %v169 = vsel %vm165, 1, 0
    %v170 = vsel %vm166, 1, 0
    %v171 = vadd.s32 %v153, %v167
    %v172 = vadd.s32 %v154, %v168
    %v173 = vadd.s32 %v155, %v169
    %v174 = vadd.s32 %v156, %v170
    %175 = vset.pattern.permute.xlu0 3
    %176 = vperm.xlu0 %175, %v137
    %v177 = vpop.permute.xlu0 %176
    %178 = vset.pattern.permute.xlu0 3
    %179 = vperm.xlu0 %178, %v138
    %v180 = vpop.permute.xlu0 %179
    %vm181 = vcmp.eq.s32.totalorder %v177, %v57
    %vm182 = vcmp.eq.s32.totalorder %v177, %v58
    %vm183 = vcmp.eq.s32.totalorder %v180, %v57
    %vm184 = vcmp.eq.s32.totalorder %v180, %v58
    %v185 = vsel %vm181, 1, 0
    %v186 = vsel %vm182, 1, 0
    %v187 = vsel %vm183, 1, 0
    %v188 = vsel %vm184, 1, 0
    %v189 = vadd.s32 %v171, %v185
    %v190 = vadd.s32 %v172, %v186
    %v191 = vadd.s32 %v173, %v187
    %v192 = vadd.s32 %v174, %v188
    %vm193 = vcmp.gt.s32.totalorder %v54, 0
    %v194 = vsel %vm193, %v54, 0
    %vm195 = vcmp.gt.s32.totalorder %v55, 0
    %v196 = vsel %vm195, %v55, 0
    %vm197 = vcmp.lt.s32.totalorder %v194, 31
    %v198 = vsel %vm197, %v194, 31
    %vm199 = vcmp.lt.s32.totalorder %v196, 31
    %v200 = vsel %vm199, %v196, 31
    %v201 = vadd.s32 %v198, 144
    %v202 = vadd.s32 %v200, 144
    %203 = vset.pattern.permute.xlu0 3
    %204 = vperm.xlu0 %203, %v201
    %v205 = vpop.permute.xlu0 %204
    %206 = vset.pattern.permute.xlu0 3
    %207 = vperm.xlu0 %206, %v202
    %v208 = vpop.permute.xlu0 %207
    %vm209 = vcmp.eq.s32.totalorder %v205, %v57
    %vm210 = vcmp.eq.s32.totalorder %v205, %v58
    %vm211 = vcmp.eq.s32.totalorder %v208, %v57
    %vm212 = vcmp.eq.s32.totalorder %v208, %v58
    %v213 = vsel %vm209, 1, 0
    %v214 = vsel %vm210, 1, 0
    %v215 = vsel %vm211, 1, 0
    %v216 = vsel %vm212, 1, 0
    %v217 = vadd.s32 %v189, %v213
    %v218 = vadd.s32 %v190, %v214
    %v219 = vadd.s32 %v191, %v215
    %v220 = vadd.s32 %v192, %v216
    %v221 = vadd.s32 %v198, 176
    %v222 = vadd.s32 %v200, 176
    %223 = vset.pattern.permute.xlu0 2
    %224 = vperm.xlu0 %223, %v221
    %v225 = vpop.permute.xlu0 %224
    %226 = vset.pattern.permute.xlu0 2
    %227 = vperm.xlu0 %226, %v222
    %v228 = vpop.permute.xlu0 %227
    %vm229 = vcmp.eq.s32.totalorder %v225, %v57
    %vm230 = vcmp.eq.s32.totalorder %v225, %v58
    %vm231 = vcmp.eq.s32.totalorder %v228, %v57
    %vm232 = vcmp.eq.s32.totalorder %v228, %v58
    %v233 = vsel %vm229, 1, 0
    %v234 = vsel %vm230, 1, 0
    %v235 = vsel %vm231, 1, 0
    %v236 = vsel %vm232, 1, 0
    %v237 = vadd.s32 %v217, %v233
    %v238 = vadd.s32 %v218, %v234
    %v239 = vadd.s32 %v219, %v235
    %v240 = vadd.s32 %v220, %v236
    %vm241 = vcmp.gt.s32.totalorder %v46, 0
    %v242 = vsel %vm241, %v46, 0
    %vm243 = vcmp.gt.s32.totalorder %v47, 0
    %v244 = vsel %vm243, %v47, 0
    %vm245 = vcmp.lt.s32.totalorder %v242, 1
    %v246 = vsel %vm245, %v242, 1
    %vm247 = vcmp.lt.s32.totalorder %v244, 1
    %v248 = vsel %vm247, %v244, 1
    %v249 = vadd.s32 %v246, 208
    %v250 = vadd.s32 %v248, 208
    %251 = vset.pattern.permute.xlu0 0
    %252 = vperm.xlu0 %251, %v249
    %v253 = vpop.permute.xlu0 %252
    %254 = vset.pattern.permute.xlu0 0
    %255 = vperm.xlu0 %254, %v250
    %v256 = vpop.permute.xlu0 %255
    %vm257 = vcmp.eq.s32.totalorder %v253, %v57
    %vm258 = vcmp.eq.s32.totalorder %v253, %v58
    %vm259 = vcmp.eq.s32.totalorder %v256, %v57
    %vm260 = vcmp.eq.s32.totalorder %v256, %v58
    %v261 = vsel %vm257, 1, 0
    %v262 = vsel %vm258, 1, 0
    %v263 = vsel %vm259, 1, 0
    %v264 = vsel %vm260, 1, 0
    %v265 = vadd.s32 %v237, %v261
    %v266 = vadd.s32 %v238, %v262
    %v267 = vadd.s32 %v239, %v263
    %v268 = vadd.s32 %v240, %v264
    %v269 = vcvt.s32.f32 %v265
    %v270 = vcvt.s32.f32 %v266
    %v271 = vcvt.s32.f32 %v267
    %v272 = vcvt.s32.f32 %v268
    %v273 = vpack.c.bf16 %v271, %v269
    %v274 = vpack.c.bf16 %v272, %v270
    %v275 = vld [vmem:[#allocation2] sm:$0xf]
    %v276 = vld [vmem:[#allocation2 + $0x4] sm:$0xf]
    %v277 = vld [vmem:[#allocation2 + $0x8] sm:$0xf]
    %v278 = vld [vmem:[#allocation2 + $0xc] sm:$0xf]
    %v279 = vld [vmem:[#allocation2 + $0x10] sm:$0xf]
    %v280 = vld [vmem:[#allocation2 + $0x14] sm:$0xf]
    %v281 = vld [vmem:[#allocation2 + $0x18] sm:$0xf]
    %v282 = vld [vmem:[#allocation2 + $0x1c] sm:$0xf]
    %v283 = vld [vmem:[#allocation2 + $0x20] sm:$0xf]
    %v284 = vld [vmem:[#allocation2 + $0x24] sm:$0xf]
    %v285 = vld [vmem:[#allocation2 + $0x28] sm:$0xf]
    %v286 = vld [vmem:[#allocation2 + $0x2c] sm:$0xf]
    %v287 = vld [vmem:[#allocation2 + $0x30] sm:$0xf]
    %v288 = vld [vmem:[#allocation2 + $0x34] sm:$0xf]
    %v289 = vld [vmem:[#allocation2 + $0x38] sm:$0xf]
    %v290 = vld [vmem:[#allocation2 + $0x3c] sm:$0xf]
    %v291 = vld [vmem:[#allocation2 + $0x40] sm:$0xf]
    %v292 = vld [vmem:[#allocation2 + $0x44] sm:$0xf]
    %v293 = vld [vmem:[#allocation2 + $0x48] sm:$0xf]
    %v294 = vld [vmem:[#allocation2 + $0x4c] sm:$0xf]
    %v295 = vld [vmem:[#allocation2 + $0x50] sm:$0xf]
    %v296 = vld [vmem:[#allocation2 + $0x54] sm:$0xf]
    %v297 = vld [vmem:[#allocation2 + $0x58] sm:$0xf]
    %v298 = vld [vmem:[#allocation2 + $0x5c] sm:$0xf]
    %v299 = vld [vmem:[#allocation2 + $0x60] sm:$0xf]
    %v300 = vld [vmem:[#allocation2 + $0x64] sm:$0xf]
    %v301 = vld [vmem:[#allocation2 + $0x68] sm:$0xf]
    %v302 = vld [vmem:[#allocation2 + $0x6c] sm:$0xf]
    %v303 = vld [vmem:[#allocation2 + $0x70] sm:$0xf]
    %v304 = vld [vmem:[#allocation2 + $0x74] sm:$0xf]
    %v305 = vld [vmem:[#allocation2 + $0x78] sm:$0xf]
    %v306 = vld [vmem:[#allocation2 + $0x7c] sm:$0xf]
    %v339 = vunpack.c.l.b16 %v275
    %v340 = vunpack.c.l.b16 %v276
    %v341 = vunpack.c.l.b16 %v277
    %v342 = vunpack.c.l.b16 %v278
    %v343 = vunpack.c.l.b16 %v279
    %v344 = vunpack.c.l.b16 %v280
    %v345 = vunpack.c.l.b16 %v281
    %v346 = vunpack.c.l.b16 %v282
    %v347 = vunpack.c.l.b16 %v283
    %v348 = vunpack.c.l.b16 %v284
    %v349 = vunpack.c.l.b16 %v285
    %v350 = vunpack.c.l.b16 %v286
    %v351 = vunpack.c.l.b16 %v287
    %v352 = vunpack.c.l.b16 %v288
    %v353 = vunpack.c.l.b16 %v289
    %v354 = vunpack.c.l.b16 %v290
    %v355 = vunpack.c.l.b16 %v291
    %v356 = vunpack.c.l.b16 %v292
    %v357 = vunpack.c.l.b16 %v293
    %v358 = vunpack.c.l.b16 %v294
    %v359 = vunpack.c.l.b16 %v295
    %v360 = vunpack.c.l.b16 %v296
    %v361 = vunpack.c.l.b16 %v297
    %v362 = vunpack.c.l.b16 %v298
    %v363 = vunpack.c.l.b16 %v299
    %v364 = vunpack.c.l.b16 %v300
    %v365 = vunpack.c.l.b16 %v301
    %v366 = vunpack.c.l.b16 %v302
    %v367 = vunpack.c.l.b16 %v303
    %v368 = vunpack.c.l.b16 %v304
    %v369 = vunpack.c.l.b16 %v305
    %v370 = vunpack.c.l.b16 %v306
    %v371 = vpack.c.b16 %v340, %v339
    %v372 = vpack.c.b16 %v342, %v341
    %v373 = vpack.c.b16 %v344, %v343
    %v374 = vpack.c.b16 %v346, %v345
    %v375 = vpack.c.b16 %v348, %v347
    %v376 = vpack.c.b16 %v350, %v349
    %v377 = vpack.c.b16 %v352, %v351
    %v378 = vpack.c.b16 %v354, %v353
    %v379 = vpack.c.b16 %v356, %v355
    %v380 = vpack.c.b16 %v358, %v357
    %v381 = vpack.c.b16 %v360, %v359
    %v382 = vpack.c.b16 %v362, %v361
    %v383 = vpack.c.b16 %v364, %v363
    %v384 = vpack.c.b16 %v366, %v365
    %v385 = vpack.c.b16 %v368, %v367
    %v386 = vpack.c.b16 %v370, %v369
    %403 = vmatprep.subr.bf16.mxu0 0
    %404 = vmatpush1.bf16.msra.mxu0 %v371
    %405 = vmatprep.subr.bf16.mxu0 0
    %406 = vmatpush1.bf16.msra.mxu0 %v372
    %407 = vmatprep.subr.bf16.mxu0 0
    %408 = vmatpush1.bf16.msra.mxu0 %v373
    %409 = vmatprep.subr.bf16.mxu0 0
    %410 = vmatpush1.bf16.msra.mxu0 %v374
    %411 = vmatprep.subr.bf16.mxu0 0
    %412 = vmatpush1.bf16.msra.mxu0 %v375
    %413 = vmatprep.subr.bf16.mxu0 0
    %414 = vmatpush1.bf16.msra.mxu0 %v376
    %415 = vmatprep.subr.bf16.mxu0 0
    %416 = vmatpush1.bf16.msra.mxu0 %v377
    %417 = vmatprep.subr.bf16.mxu0 0
    %418 = vmatpush1.bf16.msra.mxu0 %v378
    %419 = vmatprep.subr.bf16.mxu0 0
    %420 = vmatpush1.bf16.msra.mxu0 %v379
    %421 = vmatprep.subr.bf16.mxu0 0
    %422 = vmatpush1.bf16.msra.mxu0 %v380
    %423 = vmatprep.subr.bf16.mxu0 0
    %424 = vmatpush1.bf16.msra.mxu0 %v381
    %425 = vmatprep.subr.bf16.mxu0 0
    %426 = vmatpush1.bf16.msra.mxu0 %v382
    %427 = vmatprep.subr.bf16.mxu0 0
    %428 = vmatpush1.bf16.msra.mxu0 %v383
    %429 = vmatprep.subr.bf16.mxu0 0
    %430 = vmatpush1.bf16.msra.mxu0 %v384
    %431 = vmatprep.subr.bf16.mxu0 0
    %432 = vmatpush1.bf16.msra.mxu0 %v385
    %433 = vmatprep.subr.bf16.mxu0 0
    %434 = vmatpush1.bf16.msra.mxu0 %v386
    %435 = vmatprep.mubr.bf16.mxu0 %v274
    %436 = vmatmul.mubr.bf16.gmra.mrb[0].mxu0 %v273
    %v437 = vpop.f32.mrb[0].mxu0
    %v438 = vadd.f32 0.0, %v437
    %v439 = vpop.f32.mrb[0].mxu0
    %v440 = vpop.f32.mrb[0].mxu0
    %v441 = vadd.f32 0.0, %v440
    %v442 = vpop.f32.mrb[0].mxu0
    %443 = vdwg.mxu0
    %444 = vadd.xlane.f32.xlu0 %v438
    %v445 = vpop.xlane.xlu0 %444
    %446 = vadd.xlane.f32.xlu0 %v441
    %v447 = vpop.xlane.xlu0 %446
    %v448 = vrcp.pop 128.0
    %v449 = vmul.f32 %v445, %v448
    %v450 = vmul.f32 %v447, %v448
    %v451 = vsub.f32 %v438, %v449
    %v452 = vsub.f32 %v441, %v450
    %v453 = vmul.f32 %v451, %v451
    %v454 = vmul.f32 %v452, %v452
    %455 = vadd.xlane.f32.xlu0 %v453
    %v456 = vpop.xlane.xlu0 %455
    %457 = vadd.xlane.f32.xlu0 %v454
    %v458 = vpop.xlane.xlu0 %457
    %v459 = vmul.f32 %v456, %v448
    %v460 = vmul.f32 %v458, %v448
    %v461 = vadd.f32 %v459, 1e-12
    %v462 = vadd.f32 %v460, 1e-12
    %v463 = vrsqrt.pop %v461
    %v464 = vrsqrt.pop %v462
    %v465 = vmul.f32 %v451, %v463
    %v466 = vmul.f32 %v452, %v464
    %v467 = vld [vmem:[%s5] sm:$0x1]
    %v469 = vlaneseq
    %v470 = vshrl.u32 %v469, 7
    %v471 = vsub.s32 0, %v470
    %v472 = vrot.slane %v467, %v471
    %v474 = vmul.f32 %v465, %v472
    %v475 = vmul.f32 %v466, %v472
    %v476 = vld [vmem:[%s6] sm:$0x1]
    %v478 = vlaneseq
    %v479 = vshrl.u32 %v478, 7
    %v480 = vsub.s32 0, %v479
    %v481 = vrot.slane %v476, %v480
    %v483 = vadd.f32 %v474, %v481
    %v484 = vadd.f32 %v475, %v481
    %485 = vst [vmem:[#allocation5] sm:$0xff] %v483
    %486 = vst [vmem:[#allocation5 + $0x8] sm:$0xff] %v484
    // Predicated region
    $region34: #{tpu_custom_call.1} parent=1 // pred_check
      _
    $region35: #{tpu_custom_call.1} parent=1 // pred_check_branch
      %488 = sbr.rel (0) target = $region37
    $region36: #{tpu_custom_call.1} parent=1 // pred_region
      %s490 = ssub.s32 256, 256
      %491 = vsyncadd [#allocation4], %s490
      %s492 = sshll.u32 [#allocation5], 4
      %s493 = int_to_ptr.vmem [resolvable:$true] %s492
      %498 = dma.vmem_to_hbm [thread:$0]  %s493, 256, %s7, [#allocation4], 128, 128, 8
    $region37: #{tpu_custom_call.1} parent=1 // pred_fallthru
      _
    // Predicated region
    $region38: #{tpu_custom_call.1} parent=1 // pred_check
      _
    $region39: #{tpu_custom_call.1} parent=1 // pred_check_branch
      %500 = sbr.rel (0) target = $region41
    $region40: #{tpu_custom_call.1} parent=1 // pred_region
      %501 = dma.done [#allocation4], 256
    $region41: #{tpu_custom_call.1} parent=1 // pred_fallthru
      _
    %502 = vsyncpa [#allocation3], 1
    %503 = vsyncpa [#allocation4], 1

</llo_original>
